<compile_context>
chip_gen: v5e
topology: v5e:2x2
jax: 0.10.0
libtpu: 0.0.40
codegen_flags: <defaults>
</compile_context>

<pallas_src>
import functools

import jax
import jax.numpy as jnp
from jax.experimental import pallas as pl
from jax.experimental.pallas import tpu as pltpu

_LANE = 128
_SUBLANE = 8


def _round_up(n, m):
    return ((n + m - 1) // m) * m


def _pad2(a, rows, cols):
    return jnp.pad(a, ((0, rows - a.shape[0]), (0, cols - a.shape[1])))


def _default_weight_dtype():
    """bf16 weights on v6e/v7x (native bf16 MXU, f32 accumulate), f32 elsewhere."""
    try:
        dev = jax.devices()[0]
        if dev.platform != "tpu":
            return jnp.float32
        kind = dev.device_kind.lower()
        if "v5 lite" in kind or "v5lite" in kind or "v5e" in kind:
            return jnp.float32  # v5e: no bf16 VPU/EUP; keep f32 end-to-end
        return jnp.bfloat16
    except Exception:  # pragma: no cover - defensive
        return jnp.float32


def _pick_batch_tile(batch):
    """Tile from {128,256,512}: min last-tile waste, then >=2 tiles, then max tb."""
    if batch <= 128:
        return _round_up(max(batch, 1), _SUBLANE)
    best_key, best_tb = None, 128
    for tb in (128, 256, 512):
        n = -(-batch // tb)
        waste = n * tb - batch
        key = (waste, 0 if n >= 2 else 1, -tb)
        if best_key is None or key < best_key:
            best_key, best_tb = key, tb
    return best_tb


def pack_decoder_params(flat_params, n_hidden, weight_dtype=None):
    """One-time packing of parameters for the kernel (keep OUT of the hot path).

    flat_params = [W1, b1, ..., Wn, bn, W_a, b_a, W_b, b_b] with W_i: (in, out)
    (already transposed vs. torch Linear), b_i: (1, out).

    Layers >=2 and the fused head get zero row-padding (so sigmoid(0)=0.5 on
    padded hidden lanes is multiplied by zero weight rows and never leaks);
    the first layer keeps its true input dim so x needs no feature padding.
    The two head weights are concatenated with the second head starting at a
    128-lane-aligned column. Returns (packed_arrays, d_out).
    """
    if weight_dtype is None:
        weight_dtype = _default_weight_dtype()
    d_in = flat_params[0].shape[0]
    d_out = flat_params[-1].shape[-1]
    dims = [d_in] + [flat_params[2 * i].shape[1] for i in range(n_hidden)]
    p_dims = [d_in] + [_round_up(d, _LANE) for d in dims[1:]]
    p_half = _round_up(d_out, _LANE)

    packed = []
    for i in range(n_hidden):
        w = jnp.asarray(flat_params[2 * i], jnp.float32)
        b = jnp.asarray(flat_params[2 * i + 1], jnp.float32).reshape(1, -1)
        packed.append(_pad2(w, p_dims[i], p_dims[i + 1]).astype(weight_dtype))
        packed.append(_pad2(b, 1, p_dims[i + 1]))  # biases stay f32
    w_a, b_a, w_b, b_b = flat_params[2 * n_hidden: 2 * n_hidden + 4]
    w_head = jnp.concatenate(
        [_pad2(jnp.asarray(w_a, jnp.float32), p_dims[n_hidden], p_half),
         _pad2(jnp.asarray(w_b, jnp.float32), p_dims[n_hidden], p_half)],
        axis=1).astype(weight_dtype)
    b_head = jnp.concatenate(
        [_pad2(jnp.asarray(b_a, jnp.float32).reshape(1, -1), 1, p_half),
         _pad2(jnp.asarray(b_b, jnp.float32).reshape(1, -1), 1, p_half)],
        axis=1)
    packed.append(w_head)
    packed.append(b_head)
    return tuple(packed), d_out


def _make_decoder_kernel(n_hidden, p_half, is_gaussian):
    """Ref layout: [x] + [W_i, b_i]*n_hidden + [W_head, b_head] + [out].

    out is a lane-dense (tb, 2*p_half) slab: cols [0, p_half) hold head-1
    (mu / alpha), cols [p_half, 2*p_half) hold head-2 (sigma / beta)."""

    def kernel(*refs):
        x_ref = refs[0]
        out_ref = refs[-1]
        y = x_ref[...]                                    # (tb, d_in) float32
        idx = 1
        for _ in range(n_hidden):
            w = refs[idx][...]
            b = refs[idx + 1][...]
            idx += 2
            ym = y if y.dtype == w.dtype else y.astype(w.dtype)
            y = jax.nn.sigmoid(
                jnp.dot(ym, w, preferred_element_type=jnp.float32) + b)
        w = refs[idx][...]
        b = refs[idx + 1][...]
        ym = y if y.dtype == w.dtype else y.astype(w.dtype)
        h = jnp.dot(ym, w, preferred_element_type=jnp.float32) + b
        # Static, 128-lane-aligned sub-slabs -> two unmasked lane-dense stores.
        if is_gaussian:
            out_ref[:, :p_half] = h[:, :p_half]           # mu (no exp)
        else:
            out_ref[:, :p_half] = jnp.exp(h[:, :p_half])  # alpha
        out_ref[:, p_half:] = jnp.exp(h[:, p_half:])      # sigma / beta

    return kernel


@functools.partial(jax.jit, static_argnames=("n_hidden", "d_out", "is_gaussian"))
def decoder_forward(x, packed, n_hidden, d_out, is_gaussian=True):
    """Decoder forward pass in a single Pallas kernel.

    x:      (batch, d_in) float array.
    packed: output of pack_decoder_params (call once, reuse across steps).
    Returns (mu, sigma) for Gaussian, (alpha, beta) for Gamma, each
    (batch, d_out) float32."""
    batch, d_in = x.shape
    if x.dtype != jnp.float32:
        x = x.astype(jnp.float32)
    p_half = _round_up(d_out, _LANE)
    p_fused = 2 * p_half

    tb = _pick_batch_tile(batch)
    grid = (pl.cdiv(batch, tb),)

    in_specs = [pl.BlockSpec((tb, d_in), lambda i: (i, 0))]
    for p in packed:
        # Constant index_map -> weights/biases stay resident in VMEM.
        in_specs.append(pl.BlockSpec(p.shape, lambda i: (0, 0)))
    out_specs = pl.BlockSpec((tb, p_fused), lambda i: (i, 0))
    out_shape = jax.ShapeDtypeStruct((batch, p_fused), jnp.float32)

    # ---- cost estimate ----
    weights = packed[::2]
    rows = grid[0] * tb
    mm_flops = 2 * rows * sum(int(w.shape[0]) * int(w.shape[1]) for w in weights)
    hidden_widths = sum(int(w.shape[1]) for w in weights[:-1])
    exp_cols = p_fused if not is_gaussian else p_half
    transcendentals = rows * (hidden_widths + exp_cols)
    weight_bytes = sum(int(p.size) * jnp.dtype(p.dtype).itemsize for p in packed)
    bytes_accessed = int(x.size) * 4 + weight_bytes + batch * p_fused * 4

    # ---- explicit scoped-VMEM budget ----
    io_tile_bytes = tb * d_in * 4 + tb * p_fused * 4
    act_bytes = 4 * tb * max(int(w.shape[1]) for w in weights) * 4
    needed = 2 * weight_bytes + 2 * io_tile_bytes + act_bytes
    vmem_limit = int(min(64 << 20, max(needed + (4 << 20), 32 << 20)))

    out = pl.pallas_call(
        _make_decoder_kernel(n_hidden, p_half, is_gaussian),
        grid=grid,
        in_specs=in_specs,
        out_specs=out_specs,
        out_shape=out_shape,
        compiler_params=pltpu.CompilerParams(
            dimension_semantics=("parallel",),
            vmem_limit_bytes=vmem_limit,
        ),
        cost_estimate=pl.CostEstimate(
            flops=mm_flops,
            transcendentals=transcendentals,
            bytes_accessed=bytes_accessed,
        ),
    )(x, *packed)

    # Both slices start at 128-lane-aligned columns -> free views.
    head1 = out[:, :d_out]
    head2 = out[:, p_half:p_half + d_out]
    return head1, head2


def init_decoder_params(key, sizes):
    """Deterministic init mirroring NetworkGaussian/NetworkGamma shapes.

    Hidden linears for zip(sizes[:-2], sizes[1:-1]), then two head layers
    Linear(sizes[-2], sizes[-1]). Weights returned as (in, out)."""
    params = []
    keys = jax.random.split(key, 2 * (len(sizes) - 2) + 4)
    ki = 0
    for inp, out in zip(sizes[:-2], sizes[1:-1]):
        bound = 1.0 / jnp.sqrt(inp)
        w = jax.random.uniform(keys[ki], (inp, out), jnp.float32, -bound, bound)
        b = jax.random.uniform(keys[ki + 1], (1, out), jnp.float32, -bound, bound)
        params += [w, b]
        ki += 2
    inp, out = sizes[-2], sizes[-1]
    bound = 1.0 / jnp.sqrt(inp)
    for _ in range(2):  # head 1 (mu/alpha), head 2 (sigma/beta)
        w = jax.random.uniform(keys[ki], (inp, out), jnp.float32, -bound, bound)
        b = jax.random.uniform(keys[ki + 1], (1, out), jnp.float32, -bound, bound)
        params += [w, b]
        ki += 2
    return params


def reference_forward(x, flat_params, n_hidden, is_gaussian=True):
    """Pure-JAX reference of the same forward pass (for sanity checking)."""
    y = x
    idx = 0
    for _ in range(n_hidden):
        y = jax.nn.sigmoid(y @ flat_params[idx] + flat_params[idx + 1])
        idx += 2
    h1 = y @ flat_params[idx] + flat_params[idx + 1]
    h2 = jnp.exp(y @ flat_params[idx + 2] + flat_params[idx + 3])
    return (h1, h2) if is_gaussian else (jnp.exp(h1), h2)


if __name__ == "__main__":
    key = jax.random.PRNGKey(0)
    k_x, k_p, k_x2 = jax.random.split(key, 3)

    # sizes = [latent, hidden, out] -> one hidden sigmoid layer + two heads.
    sizes = [8, 32, 16]
    n_hidden = len(sizes) - 2
    d_out = sizes[-1]
    params = init_decoder_params(k_p, sizes)

    # Pack once (f32 weights for exact-semantics checks).
    packed_f32, d_out_p = pack_decoder_params(
        params, n_hidden, weight_dtype=jnp.float32)
    assert d_out_p == d_out

    # --- small batch (single ragged tile), Gaussian, f32: exact check ---
    batch = 4
    x = jax.random.normal(k_x, (batch, sizes[0]), jnp.float32)
    mu, sigma = decoder_forward(x, packed_f32, n_hidden=n_hidden, d_out=d_out)
    jax.block_until_ready((mu, sigma))
    mu_ref, sigma_ref = reference_forward(x, params, n_hidden)
    assert mu.shape == (batch, d_out) and sigma.shape == (batch, d_out)
    assert jnp.allclose(mu, mu_ref, atol=1e-5, rtol=1e-5)
    assert jnp.allclose(sigma, sigma_ref, atol=1e-5, rtol=1e-5)
    assert bool(jnp.all(sigma > 0))

    # --- larger batch exercising the ragged batch grid (2 tiles of 128) ---
    batch2 = 200
    x2 = jax.random.normal(k_x2, (batch2, sizes[0]), jnp.float32)
    mu2, sigma2 = decoder_forward(x2, packed_f32, n_hidden=n_hidden, d_out=d_out)
    jax.block_until_ready((mu2, sigma2))
    mu2_ref, sigma2_ref = reference_forward(x2, params, n_hidden)
    assert jnp.allclose(mu2, mu2_ref, atol=1e-5, rtol=1e-5)
    assert jnp.allclose(sigma2, sigma2_ref, atol=1e-5, rtol=1e-5)

    # --- bf16-weight path (default on v6e/v7x), loose check vs f32 ref ---
    packed_bf16, _ = pack_decoder_params(
        params, n_hidden, weight_dtype=jnp.bfloat16)
    mu_b, sigma_b = decoder_forward(
        x2, packed_bf16, n_hidden=n_hidden, d_out=d_out)
    jax.block_until_ready((mu_b, sigma_b))
    assert jnp.all(jnp.isfinite(mu_b)) and jnp.all(jnp.isfinite(sigma_b))
    assert jnp.allclose(mu_b, mu2_ref, atol=0.1, rtol=0.1)
    assert jnp.allclose(sigma_b, sigma2_ref, atol=0.1, rtol=0.1)

    # --- NetworkGamma head (is_gaussian=False): exp on both heads ---
    al, be = decoder_forward(
        x, packed_f32, n_hidden=n_hidden, d_out=d_out, is_gaussian=False)
    jax.block_until_ready((al, be))
    al_ref, be_ref = reference_forward(x, params, n_hidden, is_gaussian=False)
    assert jnp.allclose(al, al_ref, atol=1e-5, rtol=1e-5)
    assert jnp.allclose(be, be_ref, atol=1e-5, rtol=1e-5)

    print("KERNEL_OK")
</pallas_src>

<mosaic_0001>
module attributes {stable_mosaic.version = 11 : i64} {
  func.func @kernel(%arg0: i32, %arg1: memref<8x8xf32, #tpu.memory_space<vmem>>, %arg2: memref<8x128xf32, #tpu.memory_space<vmem>>, %arg3: memref<1x128xf32, #tpu.memory_space<vmem>>, %arg4: memref<128x256xf32, #tpu.memory_space<vmem>>, %arg5: memref<1x256xf32, #tpu.memory_space<vmem>>, %arg6: memref<8x256xf32, #tpu.memory_space<vmem>>) attributes {dimension_semantics = [#tpu.dimension_semantics<parallel>], iteration_bounds = array<i64: 1>, scalar_prefetch = 0 : i64, scratch_operands = 0 : i64, tpu.core_type = #tpu.core_type<tc>, window_params = [{transform_indices = @transform_0, window_bounds = array<i64: 8, 8>}, {pipeline_mode = #tpu.pipeline_mode<synchronous>, transform_indices = @transform_1, window_bounds = array<i64: 8, 128>}, {pipeline_mode = #tpu.pipeline_mode<synchronous>, transform_indices = @transform_2, window_bounds = array<i64: 1, 128>}, {pipeline_mode = #tpu.pipeline_mode<synchronous>, transform_indices = @transform_3, window_bounds = array<i64: 128, 256>}, {pipeline_mode = #tpu.pipeline_mode<synchronous>, transform_indices = @transform_4, window_bounds = array<i64: 1, 256>}, {transform_indices = @transform_5, window_bounds = array<i64: 8, 256>}]} {
    %c0 = arith.constant 0 : index
    %c0_0 = arith.constant 0 : index
    %0 = vector.load %arg1[%c0, %c0_0] : memref<8x8xf32, #tpu.memory_space<vmem>>, vector<8x8xf32>
    %c0_1 = arith.constant 0 : index
    %c0_2 = arith.constant 0 : index
    %1 = vector.load %arg2[%c0_1, %c0_2] : memref<8x128xf32, #tpu.memory_space<vmem>>, vector<8x128xf32>
    %c0_3 = arith.constant 0 : index
    %c0_4 = arith.constant 0 : index
    %2 = vector.load %arg3[%c0_3, %c0_4] : memref<1x128xf32, #tpu.memory_space<vmem>>, vector<1x128xf32>
    %cst = arith.constant dense<0.000000e+00> : vector<8x128xf32>
    %3 = tpu.matmul %0, %1, %cst {dimension_numbers = #tpu.dot_dimension_numbers<[1], [0], [0], [1], [0, 0, 1, 1], [], []>} : vector<8x8xf32>, vector<8x128xf32>, vector<8x128xf32> -> vector<8x128xf32>
    %4 = vector.broadcast %2 : vector<1x128xf32> to vector<8x128xf32>
    %5 = arith.addf %3, %4 : vector<8x128xf32>
    %6 = arith.negf %5 : vector<8x128xf32>
    %7 = math.exp %6 : vector<8x128xf32>
    %cst_5 = arith.constant 1.000000e+00 : f32
    %8 = vector.broadcast %cst_5 : f32 to vector<8x128xf32>
    %9 = arith.addf %8, %7 : vector<8x128xf32>
    %10 = arith.divf %8, %9 : vector<8x128xf32>
    %c0_6 = arith.constant 0 : index
    %c0_7 = arith.constant 0 : index
    %11 = vector.load %arg4[%c0_6, %c0_7] : memref<128x256xf32, #tpu.memory_space<vmem>>, vector<128x256xf32>
    %c0_8 = arith.constant 0 : index
    %c0_9 = arith.constant 0 : index
    %12 = vector.load %arg5[%c0_8, %c0_9] : memref<1x256xf32, #tpu.memory_space<vmem>>, vector<1x256xf32>
    %cst_10 = arith.constant dense<0.000000e+00> : vector<8x256xf32>
    %13 = tpu.matmul %10, %11, %cst_10 {dimension_numbers = #tpu.dot_dimension_numbers<[1], [0], [0], [1], [0, 0, 1, 1], [], []>} : vector<8x128xf32>, vector<128x256xf32>, vector<8x256xf32> -> vector<8x256xf32>
    %14 = vector.broadcast %12 : vector<1x256xf32> to vector<8x256xf32>
    %15 = arith.addf %13, %14 : vector<8x256xf32>
    %16 = vector.extract_strided_slice %15 {offsets = [0, 0], sizes = [8, 128], strides = [1, 1]} : vector<8x256xf32> to vector<8x128xf32>
    %c0_11 = arith.constant 0 : index
    %c0_12 = arith.constant 0 : index
    %17 = vector.load %arg6[%c0_11, %c0_12] : memref<8x256xf32, #tpu.memory_space<vmem>>, vector<8x128xf32>
    tpu.vector_store %arg6[%c0_11, %c0_12], %16 {strides = array<i32>} : memref<8x256xf32, #tpu.memory_space<vmem>>, vector<8x128xf32>,
    %18 = vector.extract_strided_slice %15 {offsets = [0, 128], sizes = [8, 128], strides = [1, 1]} : vector<8x256xf32> to vector<8x128xf32>
    %19 = math.exp %18 : vector<8x128xf32>
    %c0_13 = arith.constant 0 : index
    %c128 = arith.constant 128 : index
    %20 = vector.load %arg6[%c0_13, %c128] : memref<8x256xf32, #tpu.memory_space<vmem>>, vector<8x128xf32>
    tpu.vector_store %arg6[%c0_13, %c128], %19 {strides = array<i32>} : memref<8x256xf32, #tpu.memory_space<vmem>>, vector<8x128xf32>,
    return
  }
  func.func @transform_0(%arg0: i32) -> (i32, i32) {
    %c0_i32 = arith.constant 0 : i32
    %c0_i32_0 = arith.constant 0 : i32
    return %arg0, %c0_i32 : i32, i32
  }
  func.func @transform_1(%arg0: i32) -> (i32, i32) {
    %c0_i32 = arith.constant 0 : i32
    %c0_i32_0 = arith.constant 0 : i32
    %c0_i32_1 = arith.constant 0 : i32
    return %c0_i32, %c0_i32_0 : i32, i32
  }
  func.func @transform_2(%arg0: i32) -> (i32, i32) {
    %c0_i32 = arith.constant 0 : i32
    %c0_i32_0 = arith.constant 0 : i32
    %c0_i32_1 = arith.constant 0 : i32
    return %c0_i32, %c0_i32_0 : i32, i32
  }
  func.func @transform_3(%arg0: i32) -> (i32, i32) {
    %c0_i32 = arith.constant 0 : i32
    %c0_i32_0 = arith.constant 0 : i32
    %c0_i32_1 = arith.constant 0 : i32
    return %c0_i32, %c0_i32_0 : i32, i32
  }
  func.func @transform_4(%arg0: i32) -> (i32, i32) {
    %c0_i32 = arith.constant 0 : i32
    %c0_i32_0 = arith.constant 0 : i32
    %c0_i32_1 = arith.constant 0 : i32
    return %c0_i32, %c0_i32_0 : i32, i32
  }
  func.func @transform_5(%arg0: i32) -> (i32, i32) {
    %c0_i32 = arith.constant 0 : i32
    %c0_i32_0 = arith.constant 0 : i32
    return %arg0, %c0_i32 : i32, i32
  }
}

</mosaic_0001>

<llo_original>
// kernel: decoder_forward.1
$region0: #{decoder_forward.1}
  #allocation0 [shape = 'u32[]', space=smem, size = 0x4, offset = 0x4, fixed_abs, tag = 'smem constant byte address 0x4 - core index']
  #allocation1 [shape = 'u32[72,128]{1,0:T(1,128)}', space=vmem, size = 0x9000, scoped, tag = 'internal scratch']
  %s0 = inlined_call_operand.hbm [shape: f32[4,8], index: 0, kind: input, shape index: {}]
  %s1 = inlined_call_operand.hbm [shape: f32[8,128], index: 1, kind: input, shape index: {}]
  %s2 = inlined_call_operand.vmem [shape: f32[1,128], index: 2, kind: input, shape index: {}]
  %s3 = inlined_call_operand.hbm [shape: f32[128,256], index: 3, kind: input, shape index: {}]
  %s4 = inlined_call_operand.vmem [shape: f32[1,256], index: 4, kind: input, shape index: {}]
  %s5 = inlined_call_operand.vmem [shape: f32[4,256], index: 5, kind: output, shape index: {}]
  %s6 = sld [smem:[#allocation0]]
  $region76: #{decoder_forward.1} parent=0
    _
  %s8 = ssub.s32 1, %s6
  %s9 = scalar_select 0, %s8, %s6
  $region1: #{decoder_forward.1} parent=0
    #allocation2 [shape = 'u8[4096]{0}', space=vmem, size = 0x1000, scoped, tag = 'input window, operand 0, single buffered']
    #allocation3 [shape = 's32[1]{0}', space=sflag, size = 0x4, scoped, tag = 'scoped memory for decoder_forward.1']
    #allocation4 [shape = 'u8[4096]{0}', space=vmem, size = 0x1000, scoped, tag = 'input window, operand 1, single buffered']
    #allocation5 [shape = 's32[1]{0}', space=sflag, size = 0x4, scoped, tag = 'scoped memory for decoder_forward.1']
    #allocation6 [shape = 'u8[131072]{0}', space=vmem, size = 0x20000, scoped, tag = 'input window, operand 3, single buffered']
    #allocation7 [shape = 'u8[8192]{0}', space=vmem, size = 0x2000, scoped, tag = 'output window, operand 0, single buffered']
    %10 = vsyncpa [#allocation3], 0
    %11 = vsyncpa [#allocation5], 0
    // Predicated region
    $region2: #{decoder_forward.1} parent=1 // pred_check
      _
    $region3: #{decoder_forward.1} parent=1 // pred_check_branch
      %13 = sbr.rel (0) target = $region5
    $region4: #{decoder_forward.1} parent=1 // pred_region
      %15 = vsyncadd [#allocation3], 64
      %s16 = sshll.u32 %s0, 4
      %s17 = int_to_ptr.hbm [resolvable:$true] %s16
      %s18 = sshll.u32 [#allocation2], 4
      %s19 = int_to_ptr.vmem [resolvable:$true] %s18
      %24 = dma.hbm_to_vmem [thread:$0]  %s17, 64, %s19, [#allocation3], 64, 64, 4
    $region5: #{decoder_forward.1} parent=1 // pred_fallthru
      _
    // Predicated region
    $region6: #{decoder_forward.1} parent=1 // pred_check
      _
    $region7: #{decoder_forward.1} parent=1 // pred_check_branch
      %26 = sbr.rel (0) target = $region9
    $region8: #{decoder_forward.1} parent=1 // pred_region
      %28 = vsyncadd [#allocation5], 0
      %s30 = sshll.u32 %s1, 4
      %s31 = int_to_ptr.hbm [resolvable:$true] %s30
      %s32 = sshll.u32 [#allocation4], 4
      %s33 = int_to_ptr.vmem [resolvable:$true] %s32
      %35 = dma.hbm_to_vmem [thread:$0]  %s31, 128, %s33, [#allocation5]
    $region9: #{decoder_forward.1} parent=1 // pred_fallthru
      _
    // Predicated region
    $region10: #{decoder_forward.1} parent=1 // pred_check
      _
    $region11: #{decoder_forward.1} parent=1 // pred_check_branch
      %37 = sbr.rel (0) target = $region13
    $region12: #{decoder_forward.1} parent=1 // pred_region
      _
    $region13: #{decoder_forward.1} parent=1 // pred_fallthru
      _
    // Predicated region
    $region14: #{decoder_forward.1} parent=1 // pred_check
      _
    $region15: #{decoder_forward.1} parent=1 // pred_check_branch
      %39 = sbr.rel (0) target = $region17
    $region16: #{decoder_forward.1} parent=1 // pred_region
      %41 = vsyncadd [#allocation5], 0
      %s42 = sshll.u32 %s3, 4
      %s43 = int_to_ptr.hbm [resolvable:$true] %s42
      %s44 = sshll.u32 [#allocation6], 4
      %s45 = int_to_ptr.vmem [resolvable:$true] %s44
      %50 = dma.hbm_to_vmem [thread:$0]  %s43, 4096, %s45, [#allocation5], 256, 256, 16
    $region17: #{decoder_forward.1} parent=1 // pred_fallthru
      _
    // Predicated region
    $region18: #{decoder_forward.1} parent=1 // pred_check
      _
    $region19: #{decoder_forward.1} parent=1 // pred_check_branch
      %52 = sbr.rel (0) target = $region21
    $region20: #{decoder_forward.1} parent=1 // pred_region
      _
    $region21: #{decoder_forward.1} parent=1 // pred_fallthru
      _
    // Predicated region
    $region22: #{decoder_forward.1} parent=1 // pred_check
      _
    $region23: #{decoder_forward.1} parent=1 // pred_check_branch
      %54 = sbr.rel (0) target = $region25
    $region24: #{decoder_forward.1} parent=1 // pred_region
      %56 = dma.done [#allocation3], 128
    $region25: #{decoder_forward.1} parent=1 // pred_fallthru
      _
    // Predicated region
    $region26: #{decoder_forward.1} parent=1 // pred_check
      _
    $region27: #{decoder_forward.1} parent=1 // pred_check_branch
      %58 = sbr.rel (0) target = $region29
    $region28: #{decoder_forward.1} parent=1 // pred_region
      %60 = dma.done [#allocation5], 128
    $region29: #{decoder_forward.1} parent=1 // pred_fallthru
      _
    // Predicated region
    $region30: #{decoder_forward.1} parent=1 // pred_check
      _
    $region31: #{decoder_forward.1} parent=1 // pred_check_branch
      %62 = sbr.rel (0) target = $region33
    $region32: #{decoder_forward.1} parent=1 // pred_region
      %64 = dma.done [#allocation5], 4096
    $region33: #{decoder_forward.1} parent=1 // pred_fallthru
      _
    %v65 = vld [vmem:[#allocation2] sm:$0xff]
    %v66 = vld [vmem:[#allocation4] sm:$0xff]
    %v67 = vld [vmem:[%s2] sm:$0x1]
    %v69 = vperm.slane %v67, 0
    %vm71 = vcmask 64512
    %v73 = vsel %vm71, %v65, 0
    %75 = vmatpush.msra.mxu0 0.0
    %76 = vmatpush.msra.mxu0 0.0
    %77 = vmatpush.msra.mxu0 0.0
    %78 = vmatpush.msra.mxu0 0.0
    %79 = vmatpush.msra.mxu0 0.0
    %80 = vmatpush.msra.mxu0 0.0
    %81 = vmatpush.msra.mxu0 0.0
    %82 = vmatpush.msra.mxu0 0.0
    %83 = vmatpush.msra.mxu0 0.0
    %84 = vmatpush.msra.mxu0 0.0
    %85 = vmatpush.msra.mxu0 0.0
    %86 = vmatpush.msra.mxu0 0.0
    %87 = vmatpush.msra.mxu0 0.0
    %88 = vmatpush.msra.mxu0 0.0
    %89 = vmatpush.msra.mxu0 0.0
    %90 = vmatpush.msra.mxu0 %v66
    %91 = vmatmul.f32.gmra.mxu0 %v73
    %v92 = vpop.f32.mrf.mxu0
    %v93 = vadd.f32 %v69, %v92
    %94 = vdwg.mxu0
    %v95 = vxor.u32 %v93, 2147483648
    %v96 = vmul.f32 %v95, 1.442695
    %v97 = vpow.pop %v96
    %v98 = vadd.f32 %v97, 1.0
    %v99 = vrcp.pop %v98
    %v100 = vmul.f32 %v98, %v99
    %v101 = vsub.f32 1.0, %v100
    %v102 = vmul.f32 %v99, %v101
    %v103 = vadd.f32 %v99, %v102
    %vm104 = vweird.f32 %v98
    %vm105 = vweird.f32 %v99
    %vm106 = vmor %vm104, %vm105
    %v107 = vsel %vm106, %v99, %v103
    %v108 = vand.u32 2147483647, %v98
    %vm109 = vcmp.eq.f32.partialorder %v108, 8.507059e+37
    %v110 = vand.u32 %v98, 2147483648
    %v111 = vor.u32 1.1754944e-38, %v110
    %v112 = vsel %vm109, %v111, %v107
    %v113 = vmul.f32 1.0, %v112
    %v114 = vld [vmem:[#allocation6] sm:$0xff]
    %v115 = vld [vmem:[#allocation6 + $0x8] sm:$0xff]
    %v116 = vld [vmem:[#allocation6 + $0x10] sm:$0xff]
    %v117 = vld [vmem:[#allocation6 + $0x18] sm:$0xff]
    %v118 = vld [vmem:[#allocation6 + $0x20] sm:$0xff]
    %v119 = vld [vmem:[#allocation6 + $0x28] sm:$0xff]
    %v120 = vld [vmem:[#allocation6 + $0x30] sm:$0xff]
    %v121 = vld [vmem:[#allocation6 + $0x38] sm:$0xff]
    %v122 = vld [vmem:[#allocation6 + $0x40] sm:$0xff]
    %v123 = vld [vmem:[#allocation6 + $0x48] sm:$0xff]
    %v124 = vld [vmem:[#allocation6 + $0x50] sm:$0xff]
    %v125 = vld [vmem:[#allocation6 + $0x58] sm:$0xff]
    %v126 = vld [vmem:[#allocation6 + $0x60] sm:$0xff]
    %v127 = vld [vmem:[#allocation6 + $0x68] sm:$0xff]
    %v128 = vld [vmem:[#allocation6 + $0x70] sm:$0xff]
    %v129 = vld [vmem:[#allocation6 + $0x78] sm:$0xff]
    %v130 = vld [vmem:[#allocation6 + $0x80] sm:$0xff]
    %v131 = vld [vmem:[#allocation6 + $0x88] sm:$0xff]
    %v132 = vld [vmem:[#allocation6 + $0x90] sm:$0xff]
    %v133 = vld [vmem:[#allocation6 + $0x98] sm:$0xff]
    %v134 = vld [vmem:[#allocation6 + $0xa0] sm:$0xff]
    %v135 = vld [vmem:[#allocation6 + $0xa8] sm:$0xff]
    %v136 = vld [vmem:[#allocation6 + $0xb0] sm:$0xff]
    %v137 = vld [vmem:[#allocation6 + $0xb8] sm:$0xff]
    %v138 = vld [vmem:[#allocation6 + $0xc0] sm:$0xff]
    %v139 = vld [vmem:[#allocation6 + $0xc8] sm:$0xff]
    %v140 = vld [vmem:[#allocation6 + $0xd0] sm:$0xff]
    %v141 = vld [vmem:[#allocation6 + $0xd8] sm:$0xff]
    %v142 = vld [vmem:[#allocation6 + $0xe0] sm:$0xff]
    %v143 = vld [vmem:[#allocation6 + $0xe8] sm:$0xff]
    %v144 = vld [vmem:[#allocation6 + $0xf0] sm:$0xff]
    %v145 = vld [vmem:[#allocation6 + $0xf8] sm:$0xff]
    %v146 = vld [vmem:[%s4] sm:$0x3]
    %v148 = vperm.slane %v146, 0
    %v149 = vperm.slane %v146, 1
    %152 = vmatpush.msra.mxu0 %v144
    %153 = vmatpush.msra.mxu0 %v142
    %154 = vmatpush.msra.mxu0 %v140
    %155 = vmatpush.msra.mxu0 %v138
    %156 = vmatpush.msra.mxu0 %v136
    %157 = vmatpush.msra.mxu0 %v134
    %158 = vmatpush.msra.mxu0 %v132
    %159 = vmatpush.msra.mxu0 %v130
    %160 = vmatpush.msra.mxu0 %v128
    %161 = vmatpush.msra.mxu0 %v126
    %162 = vmatpush.msra.mxu0 %v124
    %163 = vmatpush.msra.mxu0 %v122
    %164 = vmatpush.msra.mxu0 %v120
    %165 = vmatpush.msra.mxu0 %v118
    %166 = vmatpush.msra.mxu0 %v116
    %167 = vmatpush.msra.mxu0 %v114
    %168 = vmatmul.f32.gmra.mxu0 %v113
    %v169 = vpop.f32.mrf.mxu0
    %v170 = vadd.f32 %v148, %v169
    %171 = vdwg.mxu0
    %172 = vmatpush.msra.mxu0 %v145
    %173 = vmatpush.msra.mxu0 %v143
    %174 = vmatpush.msra.mxu0 %v141
    %175 = vmatpush.msra.mxu0 %v139
    %176 = vmatpush.msra.mxu0 %v137
    %177 = vmatpush.msra.mxu0 %v135
    %178 = vmatpush.msra.mxu0 %v133
    %179 = vmatpush.msra.mxu0 %v131
    %180 = vmatpush.msra.mxu0 %v129
    %181 = vmatpush.msra.mxu0 %v127
    %182 = vmatpush.msra.mxu0 %v125
    %183 = vmatpush.msra.mxu0 %v123
    %184 = vmatpush.msra.mxu0 %v121
    %185 = vmatpush.msra.mxu0 %v119
    %186 = vmatpush.msra.mxu0 %v117
    %187 = vmatpush.msra.mxu0 %v115
    %188 = vmatmul.f32.gmra.mxu0 %v113
    %v189 = vpop.f32.mrf.mxu0
    %v190 = vadd.f32 %v149, %v189
    %191 = vdwg.mxu0
    %v193 = vrot.slane %v170, 4
    %195 = vst [vmem:[#allocation7] sm:$0xf] %v170
    %196 = vst [vmem:[#allocation7 + $0x8] sm:$0xf] %v193
    %v197 = vmul.f32 %v190, 1.442695
    %v198 = vpow.pop %v197
    %v200 = vrot.slane %v198, 4
    %202 = vst [vmem:[#allocation7 + $0x4] sm:$0xf] %v198
    %203 = vst [vmem:[#allocation7 + $0xc] sm:$0xf] %v200
    // Predicated region
    $region34: #{decoder_forward.1} parent=1 // pred_check
      _
    $region35: #{decoder_forward.1} parent=1 // pred_check_branch
      %205 = sbr.rel (0) target = $region37
    $region36: #{decoder_forward.1} parent=1 // pred_region
      // Predicated region
      $region38: #{decoder_forward.1} parent=36 // pred_check
        _
      $region39: #{decoder_forward.1} parent=36 // pred_check_branch
        %207 = sbr.rel (0) target = $region41
      $region40: #{decoder_forward.1} parent=36 // pred_region
        // Predicated region
        $region42: #{decoder_forward.1} parent=40 // pred_check
          _
        $region43: #{decoder_forward.1} parent=40 // pred_check_branch
          %209 = sbr.rel (0) target = $region45
        $region44: #{decoder_forward.1} parent=40 // pred_region
          // Predicated region
          $region57: #{decoder_forward.1} parent=44 // pred_check
            _
          $region58: #{decoder_forward.1} parent=44 // pred_check_branch
            %225 = sbr.rel (0) target = $region60
          $region59: #{decoder_forward.1} parent=44 // pred_region
            loop: start=0, step=1, limit=1
            $region61: #{decoder_forward.1} parent=59 // loop_pre_header
              _
            $region62: #{decoder_forward.1} parent=59 // loop_header
              %s227 = sphi 0, %s231
              %p228 = scmp.ge.s32.totalorder %s227, 1
              %s232 = sphi [#allocation7], [#allocation7]
              %s233 = sphi %s5, %s5
            $region63: #{decoder_forward.1} parent=59 // loop_header_branch
              %230 = sbr.rel (%p228) target = $region67
            $region64: #{decoder_forward.1} parent=59 // loop_body
              %v234 = vld [vmem:[%s232] sm:$0xff]
              %235 = vst [vmem:[%s233] sm:$0xff] %v234
            $region65: #{decoder_forward.1} parent=59 // loop_footer
              %s231 = sadd.s32 1, %s227
            $region66: #{decoder_forward.1} parent=59 // loop_footer_branch
              %226 = sbr.rel target = $region62
            $region67: #{decoder_forward.1} parent=59 // loop_exit
              _
          $region60: #{decoder_forward.1} parent=44 // pred_fallthru
            _
          // Predicated region
          $region68: #{decoder_forward.1} parent=44 // pred_check
            _
          $region69: #{decoder_forward.1} parent=44 // pred_check_branch
            %237 = sbr.rel target = $region71
          $region70: #{decoder_forward.1} parent=44 // pred_region
            _
          $region71: #{decoder_forward.1} parent=44 // pred_fallthru
            _
        $region45: #{decoder_forward.1} parent=40 // pred_fallthru
          _
        // Predicated region
        $region46: #{decoder_forward.1} parent=40 // pred_check
          _
        $region47: #{decoder_forward.1} parent=40 // pred_check_branch
          %211 = sbr.rel target = $region49
        $region48: #{decoder_forward.1} parent=40 // pred_region
          %s213 = ssub.s32 256, 1
          loop: start=0, step=1, limit=1
          $region50: #{decoder_forward.1} parent=48 // loop_pre_header
            _
          $region51: #{decoder_forward.1} parent=48 // loop_header
            %s215 = sphi 0, %s219
            %p216 = scmp.ge.s32.totalorder %s215, 1
            %s220 = sphi [#allocation7], [#allocation7]
            %s221 = sphi %s5, %s5
          $region52: #{decoder_forward.1} parent=48 // loop_header_branch
            %218 = sbr.rel (%p216) target = $region56
          $region53: #{decoder_forward.1} parent=48 // loop_body
            %v222 = vld [vmem:[%s220] sm:%s213]
            %223 = vst [vmem:[%s221] sm:%s213] %v222
          $region54: #{decoder_forward.1} parent=48 // loop_footer
            %s219 = sadd.s32 1, %s215
          $region55: #{decoder_forward.1} parent=48 // loop_footer_branch
            %214 = sbr.rel target = $region51
          $region56: #{decoder_forward.1} parent=48 // loop_exit
            _
        $region49: #{decoder_forward.1} parent=40 // pred_fallthru
          _
      $region41: #{decoder_forward.1} parent=36 // pred_fallthru
        _
      %238 = vnop
    $region37: #{decoder_forward.1} parent=1 // pred_fallthru
      _
    // Predicated region
    $region72: #{decoder_forward.1} parent=1 // pred_check
      _
    $region73: #{decoder_forward.1} parent=1 // pred_check_branch
      %240 = sbr.rel (0) target = $region75
    $region74: #{decoder_forward.1} parent=1 // pred_region
      _
    $region75: #{decoder_forward.1} parent=1 // pred_fallthru
      _
    %241 = vsyncpa [#allocation3], 1
    %242 = vsyncpa [#allocation5], 1

</llo_original>
